<compile_context>
chip_gen: v6e
topology: v6e:2x2x1
jax: 0.10.0
libtpu: 0.0.40
codegen_flags: <defaults>
</compile_context>

<pallas_src>
import functools

import jax
import jax.numpy as jnp
from jax.experimental import pallas as pl
from jax.experimental.pallas import tpu as pltpu


def _round_up(v, m):
    return ((v + m - 1) // m) * m


def _pick_vmem_limit(tile_bytes):
    """Scoped-VMEM limit: enough for the tiles + headroom, never near physical."""
    try:
        cap = int(getattr(pltpu.get_tpu_info(), "vmem_capacity_bytes", 64 << 20))
    except Exception:  # conservative fallback if the query is unavailable
        cap = 64 << 20
    ceiling = max(16 << 20, min(48 << 20, cap // 2))   # v7x: only 64 MiB per TC
    return int(max(16 << 20, min(tile_bytes + (2 << 20), ceiling)))


# ---------------------------------------------------------------------------
# Single-pass kernel: the whole (flattened) row fits in one VMEM tile.
# ---------------------------------------------------------------------------
def _normalize_kernel(x_ref, o_ref):
    # f32 cast for the reduction.  Garbage rows of a partial last row-block
    # are computed but never written back (Pallas clips the output store).
    xf = x_ref[...].astype(jnp.float32)
    sq = jnp.sum(xf * xf, axis=-1, keepdims=True)              # (rows, 1)
    # rsqrt lowers to the EUP (its own VLIW slot).  Zero rows select 0 BEFORE
    # the multiply, so they stay exactly zero.
    inv = jnp.where(sq == 0.0, 0.0, jax.lax.rsqrt(sq))
    # Re-read + re-cast instead of keeping the f32 temp live across the
    # reduction (keeps VMEM pressure predictable for bf16/int inputs).
    o_ref[...] = x_ref[...].astype(jnp.float32) * inv


# ---------------------------------------------------------------------------
# Chunked fallback (huge trailing dims): pass 1 accumulates sum(x^2) over D
# chunks and emits 1/norm; pass 2 streams x again and scales it.
# ---------------------------------------------------------------------------
def _sqsum_kernel(x_ref, inv_ref, acc_ref, *, d_total, d_tile):
    k = pl.program_id(1)

    @pl.when(k == 0)
    def _():
        acc_ref[...] = jnp.zeros_like(acc_ref)

    xf = x_ref[...].astype(jnp.float32)
    # Mask lanes past the logical end of the row: the partial last D chunk is
    # DMA-clipped, so the tail of the tile holds unspecified data.
    lane = jax.lax.broadcasted_iota(jnp.int32, xf.shape, dimension=1)
    xf = jnp.where(lane < (d_total - k * d_tile), xf, 0.0)
    acc_ref[...] += jnp.sum(xf * xf, axis=-1, keepdims=True)

    @pl.when(k == pl.num_programs(1) - 1)
    def _():
        s = acc_ref[...]
        inv_ref[...] = jnp.where(s == 0.0, 0.0, jax.lax.rsqrt(s))


def _scale_kernel(x_ref, inv_ref, o_ref):
    o_ref[...] = x_ref[...].astype(jnp.float32) * inv_ref[...]


# ---------------------------------------------------------------------------
# Wrapper
# ---------------------------------------------------------------------------
def normalize(x, *, block_budget_bytes=16 * 1024 * 1024, force_d_chunk=None):
    """L2-normalize each x[i] over all trailing dims (zero-norm rows -> zeros).

    Returns float32 with the same shape as x (the PyTorch module's .float()).
    """
    orig_shape = x.shape
    n = int(orig_shape[0])
    d = 1
    for s in orig_shape[1:]:
        d *= int(s)
    d = max(d, 1)
    x2 = x.reshape(n, d)                      # row-major reshape: free in XLA

    in_bytes = jnp.dtype(x2.dtype).itemsize
    # Conservative VMEM bytes per tile element: double-buffered input,
    # double-buffered f32 output, plus one f32 cast temp for non-f32 inputs.
    per_elem = 2 * in_bytes + 2 * 4 + (0 if x2.dtype == jnp.float32 else 4)

    use_chunked = (force_d_chunk is not None) or (8 * d * per_elem > block_budget_bytes)

    if not use_chunked:
        # ---- single pass: one full row per tile --------------------------
        # Row tile: large enough for lane-dense stores / low per-step overhead,
        # small enough that the grid has several steps (software pipelining +
        # work for both v7x TensorCores) and buffers stay ~2-8 MiB.
        row_cap = block_budget_bytes // (d * per_elem)
        pref = max(512, _round_up(pl.cdiv(n, 8), 8))      # aim for >= ~8 steps
        row_tile = min((row_cap // 8) * 8, pref, _round_up(n, 8))
        row_tile = max(8, row_tile)
        grid = (pl.cdiv(n, row_tile),)

        out = pl.pallas_call(
            _normalize_kernel,
            out_shape=jax.ShapeDtypeStruct((n, d), jnp.float32),
            grid_spec=pltpu.PrefetchScalarGridSpec(
                num_scalar_prefetch=0,
                grid=grid,
                # Last block dim == full array dim -> legal even when d is not
                # a 128-multiple; no host-side pad / slice needed.
                in_specs=[pl.BlockSpec((row_tile, d), lambda i: (i, 0))],
                out_specs=pl.BlockSpec((row_tile, d), lambda i: (i, 0)),
            ),
            compiler_params=pltpu.CompilerParams(
                dimension_semantics=("parallel",),
                vmem_limit_bytes=_pick_vmem_limit(row_tile * d * per_elem),
            ),
        )(x2)
        return out.reshape(orig_shape)

    # ---- chunked two-pass fallback ---------------------------------------
    row_tile = max(8, min(256, _round_up(n, 8)))
    if force_d_chunk is not None:
        d_tile = max(128, _round_up(int(force_d_chunk), 128))
    else:
        d_tile = max(128, (block_budget_bytes // (row_tile * per_elem)) // 128 * 128)
    d_tile = min(d_tile, _round_up(d, 128))
    grid = (pl.cdiv(n, row_tile), pl.cdiv(d, d_tile))
    vmem_limit = _pick_vmem_limit(row_tile * d_tile * per_elem)

    inv = pl.pallas_call(
        functools.partial(_sqsum_kernel, d_total=d, d_tile=d_tile),
        out_shape=jax.ShapeDtypeStruct((n, 1), jnp.float32),
        grid_spec=pltpu.PrefetchScalarGridSpec(
            num_scalar_prefetch=0,
            grid=grid,
            in_specs=[pl.BlockSpec((row_tile, d_tile), lambda i, k: (i, k))],
            out_specs=pl.BlockSpec((row_tile, 1), lambda i, k: (i, 0)),
            scratch_shapes=[pltpu.VMEM((row_tile, 1), jnp.float32)],
        ),
        compiler_params=pltpu.CompilerParams(
            dimension_semantics=("parallel", "arbitrary"),
            vmem_limit_bytes=vmem_limit,
        ),
    )(x2)

    out = pl.pallas_call(
        _scale_kernel,
        out_shape=jax.ShapeDtypeStruct((n, d), jnp.float32),
        grid_spec=pltpu.PrefetchScalarGridSpec(
            num_scalar_prefetch=0,
            grid=grid,
            in_specs=[pl.BlockSpec((row_tile, d_tile), lambda i, k: (i, k)),
                      pl.BlockSpec((row_tile, 1), lambda i, k: (i, 0))],
            out_specs=pl.BlockSpec((row_tile, d_tile), lambda i, k: (i, k)),
        ),
        compiler_params=pltpu.CompilerParams(
            dimension_semantics=("parallel", "parallel"),
            vmem_limit_bytes=vmem_limit,
        ),
    )(x2, inv)
    return out.reshape(orig_shape)


# ---------------------------------------------------------------------------
# Reference + self-test
# ---------------------------------------------------------------------------
def _reference(x):
    n = x.shape[0]
    flat = x.reshape(n, -1).astype(jnp.float32)
    norms = jnp.linalg.norm(flat, axis=-1, keepdims=True)
    safe = jnp.where(norms == 0.0, 1.0, norms)
    out = jnp.where(norms == 0.0, 0.0, flat / safe)
    return out.reshape(x.shape)


if __name__ == "__main__":
    key = jax.random.PRNGKey(0)
    k1, k2, k3 = jax.random.split(key, 3)

    # Case 1: small batch of embeddings (as in the triplet-loss model),
    # D not 128-aligned, one all-zero row.
    x1 = jax.random.normal(k1, (8, 32), dtype=jnp.float32)
    x1 = x1.at[3].set(0.0)
    o1 = jax.block_until_ready(normalize(x1))
    r1 = _reference(x1)
    assert o1.shape == x1.shape and o1.dtype == jnp.float32
    assert jnp.allclose(o1, r1, atol=1e-5, rtol=1e-5), "mismatch (case 1)"
    assert jnp.all(o1[3] == 0.0)

    # Case 2: ragged N (not a multiple of 8) and D=200 (not a 128-multiple);
    # exercises the clipped partial row-block path (no host pad/slice).
    x2 = jax.random.normal(k2, (13, 200), dtype=jnp.float32)
    x2 = x2.at[5].set(0.0)
    o2 = jax.block_until_ready(normalize(x2))
    r2 = _reference(x2)
    assert jnp.allclose(o2, r2, atol=1e-5, rtol=1e-5), "mismatch (case 2)"
    assert jnp.all(o2[5] == 0.0)

    # Case 3: same data through the D-chunked two-pass fallback (forced small
    # chunk so the masked partial-chunk path is exercised).
    o3 = jax.block_until_ready(normalize(x2, force_d_chunk=128))
    assert jnp.allclose(o3, r2, atol=1e-5, rtol=1e-5), "mismatch (case 3)"
    assert jnp.all(o3[5] == 0.0)

    # Case 4: bf16 input with conv-feature-map trailing dims (2, 4, 16, 16).
    x4 = jax.random.normal(k3, (2, 4, 16, 16), dtype=jnp.bfloat16)
    o4 = jax.block_until_ready(normalize(x4))
    r4 = _reference(x4)
    assert o4.dtype == jnp.float32
    assert jnp.allclose(o4, r4, atol=1e-5, rtol=1e-5), "mismatch (case 4)"

    print("KERNEL_OK")
</pallas_src>

<mosaic_0001>
module attributes {stable_mosaic.version = 11 : i64} {
  func.func @_normalize_kernel(%arg0: i32, %arg1: memref<8x32xf32, #tpu.memory_space<vmem>>, %arg2: memref<8x32xf32, #tpu.memory_space<vmem>>) attributes {dimension_semantics = [#tpu.dimension_semantics<parallel>], iteration_bounds = array<i64: 1>, scalar_prefetch = 0 : i64, scratch_operands = 0 : i64, tpu.core_type = #tpu.core_type<tc>, window_params = [{transform_indices = @transform_0, window_bounds = array<i64: 8, 32>}, {transform_indices = @transform_1, window_bounds = array<i64: 8, 32>}]} {
    %c0 = arith.constant 0 : index
    %c0_0 = arith.constant 0 : index
    %0 = vector.load %arg1[%c0, %c0_0] : memref<8x32xf32, #tpu.memory_space<vmem>>, vector<8x32xf32>
    %1 = arith.mulf %0, %0 : vector<8x32xf32>
    %cst = arith.constant dense<0.000000e+00> : vector<8xf32>
    %2 = vector.multi_reduction <add>, %1, %cst [1] : vector<8x32xf32> to vector<8xf32>
    %3 = vector.shape_cast %2 : vector<8xf32> to vector<8x1xf32>
    %cst_1 = arith.constant 0.000000e+00 : f32
    %4 = vector.broadcast %cst_1 : f32 to vector<8x1xf32>
    %5 = arith.cmpf oeq, %3, %4 : vector<8x1xf32>
    %6 = math.rsqrt %3 : vector<8x1xf32>
    %cst_2 = arith.constant 0.000000e+00 : f32
    %7 = vector.broadcast %cst_2 : f32 to vector<8x1xf32>
    %8 = arith.select %5, %7, %6 : vector<8x1xi1>, vector<8x1xf32>
    %c0_3 = arith.constant 0 : index
    %c0_4 = arith.constant 0 : index
    %9 = vector.load %arg1[%c0_3, %c0_4] : memref<8x32xf32, #tpu.memory_space<vmem>>, vector<8x32xf32>
    %10 = vector.broadcast %8 : vector<8x1xf32> to vector<8x32xf32>
    %11 = arith.mulf %9, %10 : vector<8x32xf32>
    %c0_5 = arith.constant 0 : index
    %c0_6 = arith.constant 0 : index
    %12 = vector.load %arg2[%c0_5, %c0_6] : memref<8x32xf32, #tpu.memory_space<vmem>>, vector<8x32xf32>
    tpu.vector_store %arg2[%c0_5, %c0_6], %11 {strides = array<i32>} : memref<8x32xf32, #tpu.memory_space<vmem>>, vector<8x32xf32>,
    return
  }
  func.func @transform_0(%arg0: i32) -> (i32, i32) {
    %c0_i32 = arith.constant 0 : i32
    %c0_i32_0 = arith.constant 0 : i32
    return %arg0, %c0_i32 : i32, i32
  }
  func.func @transform_1(%arg0: i32) -> (i32, i32) {
    %c0_i32 = arith.constant 0 : i32
    %c0_i32_0 = arith.constant 0 : i32
    return %arg0, %c0_i32 : i32, i32
  }
}

</mosaic_0001>

<llo_original>
// kernel: tpu_custom_call.1
$region0: #{tpu_custom_call.1}
  #allocation0 [shape = 'u32[]', space=smem, size = 0x4, offset = 0x4, fixed_abs, tag = 'smem constant byte address 0x4 - core index']
  #allocation1 [shape = 'u32[144,128]{1,0:T(1,128)}', space=vmem, size = 0x12000, scoped, tag = 'internal scratch']
  %s0 = inlined_call_operand.hbm [shape: f32[8,32], index: 0, kind: input, shape index: {}]
  %s1 = inlined_call_operand.hbm [shape: f32[8,32], index: 1, kind: output, shape index: {}]
  %s2 = sld [smem:[#allocation0]]
  $region18: #{tpu_custom_call.1} parent=0
    _
  %s4 = ssub.s32 1, %s2
  %s5 = scalar_select 0, %s4, %s2
  $region1: #{tpu_custom_call.1} parent=0
    #allocation2 [shape = 'u8[4096]{0}', space=vmem, size = 0x1000, scoped, tag = 'input window, operand 0, single buffered']
    #allocation3 [shape = 's32[1]{0}', space=sflag, size = 0x4, scoped, tag = 'scoped memory for tpu_custom_call.1']
    #allocation4 [shape = 's32[1]{0}', space=sflag, size = 0x4, scoped, tag = 'scoped memory for tpu_custom_call.1']
    #allocation5 [shape = 'u8[4096]{0}', space=vmem, size = 0x1000, scoped, tag = 'output window, operand 0, single buffered']
    %6 = vsyncpa [#allocation3], 0
    %7 = vsyncpa [#allocation4], 0
    // Predicated region
    $region2: #{tpu_custom_call.1} parent=1 // pred_check
      _
    $region3: #{tpu_custom_call.1} parent=1 // pred_check_branch
      %9 = sbr.rel (0) target = $region5
    $region4: #{tpu_custom_call.1} parent=1 // pred_region
      %s11 = ssub.s32 128, 128
      %12 = vsyncadd [#allocation3], %s11
      %s14 = sshll.u32 [#allocation2], 4
      %s15 = int_to_ptr.vmem [resolvable:$true] %s14
      %17 = dma.hbm_to_vmem [thread:$0]  %s0, 128, %s15, [#allocation3]
    $region5: #{tpu_custom_call.1} parent=1 // pred_fallthru
      _
    // Predicated region
    $region6: #{tpu_custom_call.1} parent=1 // pred_check
      _
    $region7: #{tpu_custom_call.1} parent=1 // pred_check_branch
      %19 = sbr.rel (0) target = $region9
    $region8: #{tpu_custom_call.1} parent=1 // pred_region
      %20 = dma.done [#allocation3], 128
    $region9: #{tpu_custom_call.1} parent=1 // pred_fallthru
      _
    %v21 = vld [vmem:[#allocation2] sm:$0xff]
    %v22 = vmul.f32 %v21, %v21
    %vm23 = vcmask 261120
    %v24 = vsel %vm23, %v22, 0.0
    %25 = vadd.xlane.f32.xlu0 %v24
    %v26 = vpop.xlane.xlu0 %25
    %vm27 = vcmp.eq.f32.partialorder %v26, 0.0
    %v28 = vrsqrt.pop %v26
    %v29 = vsel %vm27, 0.0, %v28
    %v30 = vmul.f32 %v21, %v29
    %31 = vst.msk [vmem:[#allocation5] sm:$0xff] %vm23, %v30
    // Predicated region
    $region10: #{tpu_custom_call.1} parent=1 // pred_check
      _
    $region11: #{tpu_custom_call.1} parent=1 // pred_check_branch
      %33 = sbr.rel (0) target = $region13
    $region12: #{tpu_custom_call.1} parent=1 // pred_region
      %s35 = ssub.s32 128, 128
      %36 = vsyncadd [#allocation4], %s35
      %s38 = sshll.u32 [#allocation5], 4
      %s39 = int_to_ptr.vmem [resolvable:$true] %s38
      %41 = dma.vmem_to_hbm [thread:$0]  %s39, 128, %s1, [#allocation4]
    $region13: #{tpu_custom_call.1} parent=1 // pred_fallthru
      _
    // Predicated region
    $region14: #{tpu_custom_call.1} parent=1 // pred_check
      _
    $region15: #{tpu_custom_call.1} parent=1 // pred_check_branch
      %43 = sbr.rel (0) target = $region17
    $region16: #{tpu_custom_call.1} parent=1 // pred_region
      %44 = dma.done [#allocation4], 128
    $region17: #{tpu_custom_call.1} parent=1 // pred_fallthru
      _
    %45 = vsyncpa [#allocation3], 1
    %46 = vsyncpa [#allocation4], 1

</llo_original>
